<compile_context>
chip_gen: v7x
topology: tpu7x:2x2x1
jax: 0.10.0
libtpu: 0.0.40
codegen_flags: <defaults>
</compile_context>

<pallas_src>
import jax
import jax.numpy as jnp
from jax.experimental import pallas as pl
from jax.experimental.pallas import tpu as pltpu

_LANE = 128


def _round_up(x, m):
    return ((x + m - 1) // m) * m


def _pointnet_kernel(
    x_ref,
    w1_ref, b1_ref,
    w2_ref, b2_ref,
    w3_ref, b3_ref,
    wc1_ref, bc1_ref,
    wc2_ref, bc2_ref,
    out_ref,
    acc_ref,
):
    nt = pl.program_id(1)

    # Reset the per-batch running max at the first point tile of each batch.
    @pl.when(nt == 0)
    def _():
        acc_ref[...] = jnp.full(acc_ref.shape, -jnp.inf, acc_ref.dtype)

    x = x_ref[...]                                            # (TN, 3) f32

    # fc1 (K=3, BN folded): three broadcast FMAs on the VPU — avoids pushing a
    # lane-sparse (TN, 3) operand through the MXU.
    w1 = w1_ref[...]                                          # (3, 64) f32
    h = (x[:, 0:1] * w1[0:1, :]
         + x[:, 1:2] * w1[1:2, :]
         + x[:, 2:3] * w1[2:3, :]) + b1_ref[...]
    h = jnp.maximum(h, 0.0)                                   # (TN, 64)

    # fc2 / fc3 (BN folded): bf16 MXU matmuls with f32 accumulate, f32 elementwise.
    h = jnp.dot(h.astype(jnp.bfloat16), w2_ref[...],
                preferred_element_type=jnp.float32) + b2_ref[...]
    h = jnp.maximum(h, 0.0)                                   # (TN, 128)
    h = jnp.dot(h.astype(jnp.bfloat16), w3_ref[...],
                preferred_element_type=jnp.float32) + b3_ref[...]
    h = jnp.maximum(h, 0.0)                                   # (TN, 256)

    # Running global max pool over the point axis (torch.max(x, dim=1)[0]).
    acc_ref[...] = jnp.maximum(acc_ref[...], jnp.max(h, axis=0, keepdims=True))

    # Classifier head: runs once per batch, on the last point tile.
    @pl.when(nt == pl.num_programs(1) - 1)
    def _():
        pooled = acc_ref[...]                                 # (1, 256)
        g = jnp.dot(pooled.astype(jnp.bfloat16), wc1_ref[...],
                    preferred_element_type=jnp.float32) + bc1_ref[...]
        g = jnp.maximum(g, 0.0)                               # (1, 128)
        # TODO(synk): Dropout(p=0.3) is the identity in inference mode; the
        # training-mode stochastic mask is intentionally not implemented here.
        out_ref[...] = jnp.dot(g.astype(jnp.bfloat16), wc2_ref[...],
                               preferred_element_type=jnp.float32) + bc2_ref[...]


def pointnet_forward(x, params, *, point_tile=2048):
    """x: (B, N, 3) float32; params: flat list from init_params (BN already folded)."""
    w1, b1, w2, b2, w3, b3, wc1, bc1, wc2, bc2 = params
    num_classes = wc2.shape[-1]
    B, N, D = x.shape
    assert D == 3

    # Point tile: multiple of 8 sublanes, capped so per-step intermediates
    # (TN * (64+128+256) f32 ≈ 1.75 KiB/row) stay well under v7x's 64 MiB VMEM.
    TN = max(8, min(point_tile, _round_up(N, 8)))
    N_pad = _round_up(N, TN)
    if N_pad != N:
        # Pad by repeating the last point; duplicates do not change the max pool.
        pad = jnp.broadcast_to(x[:, -1:, :], (B, N_pad - N, D))
        x = jnp.concatenate([x, pad], axis=1)
    x = x.astype(jnp.float32)
    n_tiles = N_pad // TN

    # bf16 weights for the MXU (fc1 stays f32 on the VPU path).
    w2b = w2.astype(jnp.bfloat16)
    w3b = w3.astype(jnp.bfloat16)
    wc1b = wc1.astype(jnp.bfloat16)

    # Lane-dense head output: pad num_classes up to a multiple of 128, slice after.
    NC = _round_up(num_classes, _LANE)
    wc2p = jnp.zeros((wc2.shape[0], NC), jnp.float32).at[:, :num_classes].set(wc2)
    wc2p = wc2p.astype(jnp.bfloat16)
    bc2p = jnp.zeros((1, NC), jnp.float32).at[:, :num_classes].set(bc2)

    weight_args = (w1.astype(jnp.float32), b1, w2b, b2, w3b, b3, wc1b, bc1, wc2p, bc2p)

    def const_spec(a):
        # Full-array block, constant block index -> DMA'd once, VMEM-resident.
        return pl.BlockSpec(a.shape, lambda b, n: (0,) * a.ndim)

    grid_spec = pltpu.PrefetchScalarGridSpec(
        num_scalar_prefetch=0,
        grid=(B, n_tiles),
        in_specs=[pl.BlockSpec((None, TN, 3), lambda b, n: (b, n, 0))]
                 + [const_spec(a) for a in weight_args],
        out_specs=pl.BlockSpec((None, 1, NC), lambda b, n: (b, 0, 0)),
        scratch_shapes=[pltpu.VMEM((1, 256), jnp.float32)],
    )

    out = pl.pallas_call(
        _pointnet_kernel,
        out_shape=jax.ShapeDtypeStruct((B, 1, NC), jnp.float32),
        grid_spec=grid_spec,
        compiler_params=pltpu.CompilerParams(
            dimension_semantics=("parallel", "arbitrary"),
            vmem_limit_bytes=32 * 1024 * 1024,
        ),
    )(x, *weight_args)
    return out[:, 0, :num_classes]


def init_params(key, num_classes=1, eps=1e-5):
    """Deterministic synthetic parameters matching the PyTorch module shapes.

    Linear weights are stored transposed as (in, out).  Each inference-mode
    BatchNorm1d is folded into the preceding Linear:
      scale = gamma / sqrt(var + eps);  W' = W * scale;  b' = b * scale + shift
    with shift = beta - mean * scale.  Returns [w1,b1,w2,b2,w3,b3,wc1,bc1,wc2,bc2].
    """
    layer_dims = [(3, 64), (64, 128), (128, 256), (256, 128)]  # fc1..fc3, cls_fc1
    keys = iter(jax.random.split(key, 32))
    params = []
    for din, dout in layer_dims:
        w = 0.1 * jax.random.normal(next(keys), (din, dout), jnp.float32)
        b = 0.1 * jax.random.normal(next(keys), (1, dout), jnp.float32)
        gamma = 1.0 + 0.1 * jax.random.normal(next(keys), (1, dout), jnp.float32)
        beta = 0.1 * jax.random.normal(next(keys), (1, dout), jnp.float32)
        mean = 0.05 * jax.random.normal(next(keys), (1, dout), jnp.float32)
        var = 1.0 + 0.25 * jax.random.uniform(next(keys), (1, dout), jnp.float32)
        scale = gamma / jnp.sqrt(var + eps)
        shift = beta - mean * scale
        params += [w * scale, b * scale + shift]               # BN folded into (W, b)
    # cls_fc2 (no BatchNorm)
    w = 0.1 * jax.random.normal(next(keys), (128, num_classes), jnp.float32)
    b = 0.1 * jax.random.normal(next(keys), (1, num_classes), jnp.float32)
    params += [w, b]
    return params


def pointnet_reference(x, params):
    """Pure-JAX f32 reference (same folded params) for correctness checking."""
    w1, b1, w2, b2, w3, b3, wc1, bc1, wc2, bc2 = params
    h = jnp.maximum(x @ w1 + b1, 0.0)
    h = jnp.maximum(h @ w2 + b2, 0.0)
    h = jnp.maximum(h @ w3 + b3, 0.0)
    pooled = jnp.max(h, axis=1)
    g = jnp.maximum(pooled @ wc1 + bc1, 0.0)
    return g @ wc2 + bc2


if __name__ == "__main__":
    key = jax.random.PRNGKey(0)
    k_params, k_x = jax.random.split(key)

    # Small deterministic test; point_tile=8 forces multiple point tiles per batch
    # plus the N-padding path, exercising the running-max accumulator and the
    # pl.when-gated head.  (For real benchmarking use e.g. B=32, N=4096.)
    B, N, D = 2, 20, 3
    num_classes = 1
    params = init_params(k_params, num_classes=num_classes)
    x = jax.random.normal(k_x, (B, N, D), jnp.float32)

    out = pointnet_forward(x, params, point_tile=8)
    jax.block_until_ready(out)
    assert out.shape == (B, num_classes), out.shape
    assert out.dtype == jnp.float32

    ref = pointnet_reference(x, params)
    assert jnp.all(jnp.isfinite(out))
    # bf16 MXU operands vs f32 reference -> generous tolerance.
    assert jnp.allclose(out, ref, atol=1e-1, rtol=1e-1), (out, ref)
    print("KERNEL_OK")
</pallas_src>

<mosaic_0001>
module attributes {stable_mosaic.version = 11 : i64} {
  func.func @_pointnet_kernel(%arg0: i32, %arg1: i32, %arg2: memref<1x8x3xf32, #tpu.memory_space<vmem>>, %arg3: memref<3x64xf32, #tpu.memory_space<vmem>>, %arg4: memref<1x64xf32, #tpu.memory_space<vmem>>, %arg5: memref<64x128xbf16, #tpu.memory_space<vmem>>, %arg6: memref<1x128xf32, #tpu.memory_space<vmem>>, %arg7: memref<128x256xbf16, #tpu.memory_space<vmem>>, %arg8: memref<1x256xf32, #tpu.memory_space<vmem>>, %arg9: memref<256x128xbf16, #tpu.memory_space<vmem>>, %arg10: memref<1x128xf32, #tpu.memory_space<vmem>>, %arg11: memref<128x128xbf16, #tpu.memory_space<vmem>>, %arg12: memref<1x128xf32, #tpu.memory_space<vmem>>, %arg13: memref<1x1x128xf32, #tpu.memory_space<vmem>>, %arg14: memref<1x256xf32, #tpu.memory_space<vmem>>) attributes {dimension_semantics = [#tpu.dimension_semantics<parallel>, #tpu.dimension_semantics<arbitrary>], iteration_bounds = array<i64: 2, 3>, scalar_prefetch = 0 : i64, scratch_operands = 1 : i64, tpu.core_type = #tpu.core_type<tc>, window_params = [{transform_indices = @transform_0, window_bounds = array<i64: 1, 8, 3>}, {pipeline_mode = #tpu.pipeline_mode<synchronous>, transform_indices = @transform_1, window_bounds = array<i64: 3, 64>}, {pipeline_mode = #tpu.pipeline_mode<synchronous>, transform_indices = @transform_2, window_bounds = array<i64: 1, 64>}, {pipeline_mode = #tpu.pipeline_mode<synchronous>, transform_indices = @transform_3, window_bounds = array<i64: 64, 128>}, {pipeline_mode = #tpu.pipeline_mode<synchronous>, transform_indices = @transform_4, window_bounds = array<i64: 1, 128>}, {pipeline_mode = #tpu.pipeline_mode<synchronous>, transform_indices = @transform_5, window_bounds = array<i64: 128, 256>}, {pipeline_mode = #tpu.pipeline_mode<synchronous>, transform_indices = @transform_6, window_bounds = array<i64: 1, 256>}, {pipeline_mode = #tpu.pipeline_mode<synchronous>, transform_indices = @transform_7, window_bounds = array<i64: 256, 128>}, {pipeline_mode = #tpu.pipeline_mode<synchronous>, transform_indices = @transform_8, window_bounds = array<i64: 1, 128>}, {pipeline_mode = #tpu.pipeline_mode<synchronous>, transform_indices = @transform_9, window_bounds = array<i64: 128, 128>}, {pipeline_mode = #tpu.pipeline_mode<synchronous>, transform_indices = @transform_10, window_bounds = array<i64: 1, 128>}, {transform_indices = @transform_11, window_bounds = array<i64: 1, 1, 128>}]} {
    %c0_i32 = arith.constant 0 : i32
    %0 = arith.cmpi eq, %arg1, %c0_i32 : i32
    %1 = arith.extui %0 : i1 to i32
    %c0_i32_0 = arith.constant 0 : i32
    %2 = arith.cmpi ne, %1, %c0_i32_0 : i32
    scf.if %2 {
      %cst_25 = arith.constant 0xFF800000 : f32
      %52 = vector.broadcast %cst_25 : f32 to vector<1x256xf32>
      %c0_26 = arith.constant 0 : index
      %c0_27 = arith.constant 0 : index
      %53 = vector.load %arg14[%c0_26, %c0_27] : memref<1x256xf32, #tpu.memory_space<vmem>>, vector<1x256xf32>
      tpu.vector_store %arg14[%c0_26, %c0_27], %52 {strides = array<i32>} : memref<1x256xf32, #tpu.memory_space<vmem>>, vector<1x256xf32>,
    } else {
    }
    %c0 = arith.constant 0 : index
    %c0_1 = arith.constant 0 : index
    %c0_2 = arith.constant 0 : index
    %3 = vector.load %arg2[%c0, %c0_1, %c0_2] : memref<1x8x3xf32, #tpu.memory_space<vmem>>, vector<1x8x3xf32>
    %4 = vector.shape_cast %3 : vector<1x8x3xf32> to vector<8x3xf32>
    %c0_3 = arith.constant 0 : index
    %c0_4 = arith.constant 0 : index
    %5 = vector.load %arg3[%c0_3, %c0_4] : memref<3x64xf32, #tpu.memory_space<vmem>>, vector<3x64xf32>
    %6 = vector.extract_strided_slice %4 {offsets = [0, 0], sizes = [8, 1], strides = [1, 1]} : vector<8x3xf32> to vector<8x1xf32>
    %7 = vector.extract_strided_slice %5 {offsets = [0, 0], sizes = [1, 64], strides = [1, 1]} : vector<3x64xf32> to vector<1x64xf32>
    %8 = vector.broadcast %6 : vector<8x1xf32> to vector<8x64xf32>
    %9 = vector.broadcast %7 : vector<1x64xf32> to vector<8x64xf32>
    %10 = arith.mulf %8, %9 : vector<8x64xf32>
    %11 = vector.extract_strided_slice %4 {offsets = [0, 1], sizes = [8, 1], strides = [1, 1]} : vector<8x3xf32> to vector<8x1xf32>
    %12 = vector.extract_strided_slice %5 {offsets = [1, 0], sizes = [1, 64], strides = [1, 1]} : vector<3x64xf32> to vector<1x64xf32>
    %13 = vector.broadcast %11 : vector<8x1xf32> to vector<8x64xf32>
    %14 = vector.broadcast %12 : vector<1x64xf32> to vector<8x64xf32>
    %15 = arith.mulf %13, %14 : vector<8x64xf32>
    %16 = arith.addf %10, %15 : vector<8x64xf32>
    %17 = vector.extract_strided_slice %4 {offsets = [0, 2], sizes = [8, 1], strides = [1, 1]} : vector<8x3xf32> to vector<8x1xf32>
    %18 = vector.extract_strided_slice %5 {offsets = [2, 0], sizes = [1, 64], strides = [1, 1]} : vector<3x64xf32> to vector<1x64xf32>
    %19 = vector.broadcast %17 : vector<8x1xf32> to vector<8x64xf32>
    %20 = vector.broadcast %18 : vector<1x64xf32> to vector<8x64xf32>
    %21 = arith.mulf %19, %20 : vector<8x64xf32>
    %22 = arith.addf %16, %21 : vector<8x64xf32>
    %c0_5 = arith.constant 0 : index
    %c0_6 = arith.constant 0 : index
    %23 = vector.load %arg4[%c0_5, %c0_6] : memref<1x64xf32, #tpu.memory_space<vmem>>, vector<1x64xf32>
    %24 = vector.broadcast %23 : vector<1x64xf32> to vector<8x64xf32>
    %25 = arith.addf %22, %24 : vector<8x64xf32>
    %cst = arith.constant 0.000000e+00 : f32
    %26 = vector.broadcast %cst : f32 to vector<8x64xf32>
    %27 = arith.maximumf %25, %26 : vector<8x64xf32>
    %28 = arith.truncf %27 : vector<8x64xf32> to vector<8x64xbf16>
    %c0_7 = arith.constant 0 : index
    %c0_8 = arith.constant 0 : index
    %29 = vector.load %arg5[%c0_7, %c0_8] : memref<64x128xbf16, #tpu.memory_space<vmem>>, vector<64x128xbf16>
    %cst_9 = arith.constant dense<0.000000e+00> : vector<8x128xf32>
    %30 = tpu.matmul %28, %29, %cst_9 {dimension_numbers = #tpu.dot_dimension_numbers<[1], [0], [0], [1], [0, 0, 1, 1], [], []>} : vector<8x64xbf16>, vector<64x128xbf16>, vector<8x128xf32> -> vector<8x128xf32>
    %c0_10 = arith.constant 0 : index
    %c0_11 = arith.constant 0 : index
    %31 = vector.load %arg6[%c0_10, %c0_11] : memref<1x128xf32, #tpu.memory_space<vmem>>, vector<1x128xf32>
    %32 = vector.broadcast %31 : vector<1x128xf32> to vector<8x128xf32>
    %33 = arith.addf %30, %32 : vector<8x128xf32>
    %cst_12 = arith.constant 0.000000e+00 : f32
    %34 = vector.broadcast %cst_12 : f32 to vector<8x128xf32>
    %35 = arith.maximumf %33, %34 : vector<8x128xf32>
    %36 = arith.truncf %35 : vector<8x128xf32> to vector<8x128xbf16>
    %c0_13 = arith.constant 0 : index
    %c0_14 = arith.constant 0 : index
    %37 = vector.load %arg7[%c0_13, %c0_14] : memref<128x256xbf16, #tpu.memory_space<vmem>>, vector<128x256xbf16>
    %cst_15 = arith.constant dense<0.000000e+00> : vector<8x256xf32>
    %38 = tpu.matmul %36, %37, %cst_15 {dimension_numbers = #tpu.dot_dimension_numbers<[1], [0], [0], [1], [0, 0, 1, 1], [], []>} : vector<8x128xbf16>, vector<128x256xbf16>, vector<8x256xf32> -> vector<8x256xf32>
    %c0_16 = arith.constant 0 : index
    %c0_17 = arith.constant 0 : index
    %39 = vector.load %arg8[%c0_16, %c0_17] : memref<1x256xf32, #tpu.memory_space<vmem>>, vector<1x256xf32>
    %40 = vector.broadcast %39 : vector<1x256xf32> to vector<8x256xf32>
    %41 = arith.addf %38, %40 : vector<8x256xf32>
    %cst_18 = arith.constant 0.000000e+00 : f32
    %42 = vector.broadcast %cst_18 : f32 to vector<8x256xf32>
    %43 = arith.maximumf %41, %42 : vector<8x256xf32>
    %c0_19 = arith.constant 0 : index
    %c0_20 = arith.constant 0 : index
    %44 = vector.load %arg14[%c0_19, %c0_20] : memref<1x256xf32, #tpu.memory_space<vmem>>, vector<1x256xf32>
    %cst_21 = arith.constant dense<0xFF800000> : vector<256xf32>
    %45 = vector.multi_reduction <maximumf>, %43, %cst_21 [0] : vector<8x256xf32> to vector<256xf32>
    %46 = vector.shape_cast %45 : vector<256xf32> to vector<1x256xf32>
    %47 = arith.maximumf %44, %46 : vector<1x256xf32>
    %c0_22 = arith.constant 0 : index
    %c0_23 = arith.constant 0 : index
    %48 = vector.load %arg14[%c0_22, %c0_23] : memref<1x256xf32, #tpu.memory_space<vmem>>, vector<1x256xf32>
    tpu.vector_store %arg14[%c0_22, %c0_23], %47 {strides = array<i32>} : memref<1x256xf32, #tpu.memory_space<vmem>>, vector<1x256xf32>,
    %c2_i32 = arith.constant 2 : i32
    %49 = arith.cmpi eq, %arg1, %c2_i32 : i32
    %50 = arith.extui %49 : i1 to i32
    %c0_i32_24 = arith.constant 0 : i32
    %51 = arith.cmpi ne, %50, %c0_i32_24 : i32
    scf.if %51 {
      %c0_25 = arith.constant 0 : index
      %c0_26 = arith.constant 0 : index
      %52 = vector.load %arg14[%c0_25, %c0_26] : memref<1x256xf32, #tpu.memory_space<vmem>>, vector<1x256xf32>
      %53 = arith.truncf %52 : vector<1x256xf32> to vector<1x256xbf16>
      %c0_27 = arith.constant 0 : index
      %c0_28 = arith.constant 0 : index
      %54 = vector.load %arg9[%c0_27, %c0_28] : memref<256x128xbf16, #tpu.memory_space<vmem>>, vector<256x128xbf16>
      %cst_29 = arith.constant dense<0.000000e+00> : vector<1x128xf32>
      %55 = tpu.matmul %53, %54, %cst_29 {dimension_numbers = #tpu.dot_dimension_numbers<[1], [0], [0], [1], [0, 0, 1, 1], [], []>} : vector<1x256xbf16>, vector<256x128xbf16>, vector<1x128xf32> -> vector<1x128xf32>
      %c0_30 = arith.constant 0 : index
      %c0_31 = arith.constant 0 : index
      %56 = vector.load %arg10[%c0_30, %c0_31] : memref<1x128xf32, #tpu.memory_space<vmem>>, vector<1x128xf32>
      %57 = arith.addf %55, %56 : vector<1x128xf32>
      %cst_32 = arith.constant 0.000000e+00 : f32
      %58 = vector.broadcast %cst_32 : f32 to vector<1x128xf32>
      %59 = arith.maximumf %57, %58 : vector<1x128xf32>
      %60 = arith.truncf %59 : vector<1x128xf32> to vector<1x128xbf16>
      %c0_33 = arith.constant 0 : index
      %c0_34 = arith.constant 0 : index
      %61 = vector.load %arg11[%c0_33, %c0_34] : memref<128x128xbf16, #tpu.memory_space<vmem>>, vector<128x128xbf16>
      %cst_35 = arith.constant dense<0.000000e+00> : vector<1x128xf32>
      %62 = tpu.matmul %60, %61, %cst_35 {dimension_numbers = #tpu.dot_dimension_numbers<[1], [0], [0], [1], [0, 0, 1, 1], [], []>} : vector<1x128xbf16>, vector<128x128xbf16>, vector<1x128xf32> -> vector<1x128xf32>
      %c0_36 = arith.constant 0 : index
      %c0_37 = arith.constant 0 : index
      %63 = vector.load %arg12[%c0_36, %c0_37] : memref<1x128xf32, #tpu.memory_space<vmem>>, vector<1x128xf32>
      %64 = arith.addf %62, %63 : vector<1x128xf32>
      %c0_38 = arith.constant 0 : index
      %c0_39 = arith.constant 0 : index
      %c0_40 = arith.constant 0 : index
      %65 = vector.load %arg13[%c0_38, %c0_39, %c0_40] : memref<1x1x128xf32, #tpu.memory_space<vmem>>, vector<1x1x128xf32>
      %66 = vector.shape_cast %65 : vector<1x1x128xf32> to vector<1x128xf32>
      %67 = vector.shape_cast %64 : vector<1x128xf32> to vector<1x1x128xf32>
      tpu.vector_store %arg13[%c0_38, %c0_39, %c0_40], %67 {strides = array<i32>} : memref<1x1x128xf32, #tpu.memory_space<vmem>>, vector<1x1x128xf32>,
    } else {
    }
    return
  }
  func.func @transform_0(%arg0: i32, %arg1: i32) -> (i32, i32, i32) {
    %c0_i32 = arith.constant 0 : i32
    %c0_i32_0 = arith.constant 0 : i32
    return %arg0, %arg1, %c0_i32 : i32, i32, i32
  }
  func.func @transform_1(%arg0: i32, %arg1: i32) -> (i32, i32) {
    %c0_i32 = arith.constant 0 : i32
    %c0_i32_0 = arith.constant 0 : i32
    %c0_i32_1 = arith.constant 0 : i32
    return %c0_i32, %c0_i32_0 : i32, i32
  }
  func.func @transform_2(%arg0: i32, %arg1: i32) -> (i32, i32) {
    %c0_i32 = arith.constant 0 : i32
    %c0_i32_0 = arith.constant 0 : i32
    %c0_i32_1 = arith.constant 0 : i32
    return %c0_i32, %c0_i32_0 : i32, i32
  }
  func.func @transform_3(%arg0: i32, %arg1: i32) -> (i32, i32) {
    %c0_i32 = arith.constant 0 : i32
    %c0_i32_0 = arith.constant 0 : i32
    %c0_i32_1 = arith.constant 0 : i32
    return %c0_i32, %c0_i32_0 : i32, i32
  }
  func.func @transform_4(%arg0: i32, %arg1: i32) -> (i32, i32) {
    %c0_i32 = arith.constant 0 : i32
    %c0_i32_0 = arith.constant 0 : i32
    %c0_i32_1 = arith.constant 0 : i32
    return %c0_i32, %c0_i32_0 : i32, i32
  }
  func.func @transform_5(%arg0: i32, %arg1: i32) -> (i32, i32) {
    %c0_i32 = arith.constant 0 : i32
    %c0_i32_0 = arith.constant 0 : i32
    %c0_i32_1 = arith.constant 0 : i32
    return %c0_i32, %c0_i32_0 : i32, i32
  }
  func.func @transform_6(%arg0: i32, %arg1: i32) -> (i32, i32) {
    %c0_i32 = arith.constant 0 : i32
    %c0_i32_0 = arith.constant 0 : i32
    %c0_i32_1 = arith.constant 0 : i32
    return %c0_i32, %c0_i32_0 : i32, i32
  }
  func.func @transform_7(%arg0: i32, %arg1: i32) -> (i32, i32) {
    %c0_i32 = arith.constant 0 : i32
    %c0_i32_0 = arith.constant 0 : i32
    %c0_i32_1 = arith.constant 0 : i32
    return %c0_i32, %c0_i32_0 : i32, i32
  }
  func.func @transform_8(%arg0: i32, %arg1: i32) -> (i32, i32) {
    %c0_i32 = arith.constant 0 : i32
    %c0_i32_0 = arith.constant 0 : i32
    %c0_i32_1 = arith.constant 0 : i32
    return %c0_i32, %c0_i32_0 : i32, i32
  }
  func.func @transform_9(%arg0: i32, %arg1: i32) -> (i32, i32) {
    %c0_i32 = arith.constant 0 : i32
    %c0_i32_0 = arith.constant 0 : i32
    %c0_i32_1 = arith.constant 0 : i32
    return %c0_i32, %c0_i32_0 : i32, i32
  }
  func.func @transform_10(%arg0: i32, %arg1: i32) -> (i32, i32) {
    %c0_i32 = arith.constant 0 : i32
    %c0_i32_0 = arith.constant 0 : i32
    %c0_i32_1 = arith.constant 0 : i32
    return %c0_i32, %c0_i32_0 : i32, i32
  }
  func.func @transform_11(%arg0: i32, %arg1: i32) -> (i32, i32, i32) {
    %c0_i32 = arith.constant 0 : i32
    %c0_i32_0 = arith.constant 0 : i32
    %c0_i32_1 = arith.constant 0 : i32
    return %arg0, %c0_i32, %c0_i32_0 : i32, i32, i32
  }
}

</mosaic_0001>

<llo_original>
// kernel: tpu_custom_call.1
$region0: #{tpu_custom_call.1}
  #allocation0 [shape = 'u32[]', space=smem, size = 0x4, offset = 0x4, fixed_abs, tag = 'smem constant byte address 0x4 - core index']
  #allocation1 [shape = 'u32[144,128]{1,0:T(1,128)}', space=vmem, size = 0x12000, scoped, tag = 'internal scratch']
  #allocation2 [shape = 'f32[1,256]{1,0:T(1,128)}', space=vmem, size = 0x400, scoped, tag = 'scratch operand']
  %s0 = inlined_call_operand.vmem [shape: f32[2,24,3], index: 0, kind: input, shape index: {}]
  %s1 = inlined_call_operand.vmem [shape: f32[3,64], index: 1, kind: input, shape index: {}]
  %s2 = inlined_call_operand.vmem [shape: f32[1,64], index: 2, kind: input, shape index: {}]
  %s3 = inlined_call_operand.hbm [shape: bf16[64,128], index: 3, kind: input, shape index: {}]
  %s4 = inlined_call_operand.vmem [shape: f32[1,128], index: 4, kind: input, shape index: {}]
  %s5 = inlined_call_operand.hbm [shape: bf16[128,256], index: 5, kind: input, shape index: {}]
  %s6 = inlined_call_operand.vmem [shape: f32[1,256], index: 6, kind: input, shape index: {}]
  %s7 = inlined_call_operand.hbm [shape: bf16[256,128], index: 7, kind: input, shape index: {}]
  %s8 = inlined_call_operand.vmem [shape: f32[1,128], index: 8, kind: input, shape index: {}]
  %s9 = inlined_call_operand.vmem [shape: bf16[128,128], index: 9, kind: input, shape index: {}]
  %s10 = inlined_call_operand.vmem [shape: f32[1,128], index: 10, kind: input, shape index: {}]
  %s11 = inlined_call_operand.hbm [shape: f32[2,1,128], index: 11, kind: output, shape index: {}]
  %s12 = sld [smem:[#allocation0]]
  $region97: #{tpu_custom_call.1} parent=0
    _
  %s14 = ssub.s32 1, %s12
  %s15 = scalar_select 0, %s14, %s12
  $region1: #{tpu_custom_call.1} parent=0
    #allocation3 [shape = 'u8[16384]{0}', space=vmem, size = 0x4000, scoped, tag = 'input window, operand 3, single buffered']
    #allocation4 [shape = 's32[2]{0}', space=sflag, size = 0x8, scoped, tag = 'scoped memory for tpu_custom_call.1']
    #allocation5 [shape = 's32[2]{0}', space=sflag, size = 0x8, scoped, tag = 'scoped memory for tpu_custom_call.1']
    #allocation6 [shape = 'u8[65536]{0}', space=vmem, size = 0x10000, scoped, tag = 'input window, operand 5, single buffered']
    #allocation7 [shape = 's32[1]{0}', space=sflag, size = 0x4, scoped, tag = 'scoped memory for tpu_custom_call.1']
    #allocation8 [shape = 'u8[65536]{0}', space=vmem, size = 0x10000, scoped, tag = 'input window, operand 7, single buffered']
    #allocation9 [shape = 'u8[1024]{0}', space=vmem, size = 0x400, scoped, tag = 'output window, operand 0']
    %16 = vsyncpa [#allocation4], 0
    %17 = vsyncpa [#allocation7], 0
    %18 = vsyncpa [#allocation5], 0
    %s19 = scalar_lea.sflag [#allocation5], 1
    %20 = vsyncpa %s19, 0
    loop: start=0, step=1, limit=8
    $region2: #{tpu_custom_call.1} parent=1 // loop_pre_header
      _
    $region3: #{tpu_custom_call.1} parent=1 // loop_header
      %s22 = sphi 0, %s26
      %p23 = scmp.ge.s32.totalorder %s22, 8
      %s29 = sphi 0, %s41
      %s30 = sphi 0, %s37
      %s31 = sphi 0, %s29
      %s32 = sphi 0, %s30
      %s33 = sphi 0, %s31
      %s34 = sphi 0, %s32
      %s46 = sphi 0, %s48
      %s49 = sphi 0, %s46
      %s50 = sphi 0, %s49
      %s66 = sphi 0, %s50
      %s70 = sphi 0, %s70
      %s72 = sphi 0, %s70
      %s73 = sphi 0, %s72
      %s87 = sphi 0, %s73
      %s91 = sphi 0, %s91
      %s93 = sphi 0, %s91
      %s94 = sphi 0, %s93
      %s108 = sphi 0, %s94
      %s112 = sphi 0, %s112
      %s114 = sphi 0, %s112
      %s115 = sphi 0, %s114
      %s129 = sphi 0, %s115
      %s133 = sphi 0, %s133
      %s135 = sphi 0, %s133
      %s136 = sphi 0, %s135
      %s150 = sphi 0, %s136
      %s154 = sphi 0, %s154
      %s156 = sphi 0, %s154
      %s157 = sphi 0, %s156
      %s171 = sphi 0, %s157
      %s175 = sphi 0, %s175
      %s177 = sphi 0, %s175
      %s178 = sphi 0, %s177
      %s192 = sphi 0, %s178
      %s196 = sphi 0, %s196
      %s198 = sphi 0, %s196
      %s199 = sphi 0, %s198
      %s213 = sphi 0, %s199
      %s217 = sphi 0, %s217
      %s219 = sphi 0, %s217
      %s220 = sphi 0, %s219
      %s234 = sphi 0, %s220
      %s238 = sphi 0, %s238
      %s240 = sphi 0, %s238
      %s241 = sphi 0, %s240
      %s255 = sphi 0, %s241
      %s259 = sphi 0, %s259
      %s261 = sphi 0, %s259
      %s262 = sphi 0, %s261
      %s276 = sphi 0, %s262
      %s282 = sphi 0, %s284
      %s285 = sphi 0, %s282
      %s286 = sphi 0, %s285
      %s302 = sphi 0, %s286
    $region4: #{tpu_custom_call.1} parent=1 // loop_header_branch
      %25 = sbr.rel (%p23) target = $region8
    $region5: #{tpu_custom_call.1} parent=1 // loop_body
      %s27 = ssub.s32 %s22, 1
      %s28 = ssub.s32 %s22, 2
      %s35 = sadd.s32 1, %s30
      %p36 = scmp.ge.s32.totalorder %s35, 3
      %s37 = scalar_select %p36, 0, %s35
      %s38 = sadd.s32 1, %s29
      %s39 = scalar_select %p36, %s38, %s29
      %p40 = scmp.ge.s32.totalorder %s39, 2
      %s41 = scalar_select %p40, 0, %s39
      %s42 = ssub.s32 %s29, %s41
      %s43 = ssub.s32 %s30, %s37
      %s44 = sor.u32 %s42, %s43
      %p45 = scmp.eq.s32.totalorder %s44, 0
      %s47 = sadd.s32 %s46, 1
      %s48 = scalar_select %p45, %s46, %s47
      %p51 = pneg %p45
      %p52 = scmp.eq.s32.totalorder %s22, 5
      %p53 = por %p51, %p52
      %p54 = scmp.ne.s32.totalorder %s46, %s49
      %p55 = scmp.eq.s32.totalorder %s22, 0
      %p56 = por %p54, %p55
      %p57 = scmp.ne.s32.totalorder %s46, %s49
      %p58 = scmp.eq.s32.totalorder %s27, 5
      %p59 = por %p57, %p58
      %p60 = scmp.ne.s32.totalorder %s49, %s50
      %p61 = scmp.eq.s32.totalorder %s27, 0
      %p62 = por %p60, %p61
      %p63 = scmp.ne.s32.totalorder %s49, %s50
      %p64 = scmp.eq.s32.totalorder %s28, 5
      %p65 = por %p63, %p64
      %p67 = scmp.ne.s32.totalorder %s50, %s66
      %p68 = scmp.eq.s32.totalorder %s28, 0
      %p69 = por %p67, %p68
      %s71 = sadd.s32 %s70, 1
      %p74 = scmp.eq.s32.totalorder %s22, 5
      %p75 = scmp.ne.s32.totalorder %s70, %s72
      %p76 = scmp.eq.s32.totalorder %s22, 0
      %p77 = por %p75, %p76
      %p78 = scmp.ne.s32.totalorder %s70, %s72
      %p79 = scmp.eq.s32.totalorder %s27, 5
      %p80 = por %p78, %p79
      %p81 = scmp.ne.s32.totalorder %s72, %s73
      %p82 = scmp.eq.s32.totalorder %s27, 0
      %p83 = por %p81, %p82
      %p84 = scmp.ne.s32.totalorder %s72, %s73
      %p85 = scmp.eq.s32.totalorder %s28, 5
      %p86 = por %p84, %p85
      %p88 = scmp.ne.s32.totalorder %s73, %s87
      %p89 = scmp.eq.s32.totalorder %s28, 0
      %p90 = por %p88, %p89
      %s92 = sadd.s32 %s91, 1
      %p95 = scmp.eq.s32.totalorder %s22, 5
      %p96 = scmp.ne.s32.totalorder %s91, %s93
      %p97 = scmp.eq.s32.totalorder %s22, 0
      %p98 = por %p96, %p97
      %p99 = scmp.ne.s32.totalorder %s91, %s93
      %p100 = scmp.eq.s32.totalorder %s27, 5
      %p101 = por %p99, %p100
      %p102 = scmp.ne.s32.totalorder %s93, %s94
      %p103 = scmp.eq.s32.totalorder %s27, 0
      %p104 = por %p102, %p103
      %p105 = scmp.ne.s32.totalorder %s93, %s94
      %p106 = scmp.eq.s32.totalorder %s28, 5
      %p107 = por %p105, %p106
      %p109 = scmp.ne.s32.totalorder %s94, %s108
      %p110 = scmp.eq.s32.totalorder %s28, 0
      %p111 = por %p109, %p110
      %s113 = sadd.s32 %s112, 1
      %p116 = scmp.eq.s32.totalorder %s22, 5
      %p117 = scmp.ne.s32.totalorder %s112, %s114
      %p118 = scmp.eq.s32.totalorder %s22, 0
      %p119 = por %p117, %p118
      %p120 = scmp.ne.s32.totalorder %s112, %s114
      %p121 = scmp.eq.s32.totalorder %s27, 5
      %p122 = por %p120, %p121
      %p123 = scmp.ne.s32.totalorder %s114, %s115
      %p124 = scmp.eq.s32.totalorder %s27, 0
      %p125 = por %p123, %p124
      %p126 = scmp.ne.s32.totalorder %s114, %s115
      %p127 = scmp.eq.s32.totalorder %s28, 5
      %p128 = por %p126, %p127
      %p130 = scmp.ne.s32.totalorder %s115, %s129
      %p131 = scmp.eq.s32.totalorder %s28, 0
      %p132 = por %p130, %p131
      %s134 = sadd.s32 %s133, 1
      %p137 = scmp.eq.s32.totalorder %s22, 5
      %p138 = scmp.ne.s32.totalorder %s133, %s135
      %p139 = scmp.eq.s32.totalorder %s22, 0
      %p140 = por %p138, %p139
      %p141 = scmp.ne.s32.totalorder %s133, %s135
      %p142 = scmp.eq.s32.totalorder %s27, 5
      %p143 = por %p141, %p142
      %p144 = scmp.ne.s32.totalorder %s135, %s136
      %p145 = scmp.eq.s32.totalorder %s27, 0
      %p146 = por %p144, %p145
      %p147 = scmp.ne.s32.totalorder %s135, %s136
      %p148 = scmp.eq.s32.totalorder %s28, 5
      %p149 = por %p147, %p148
      %p151 = scmp.ne.s32.totalorder %s136, %s150
      %p152 = scmp.eq.s32.totalorder %s28, 0
      %p153 = por %p151, %p152
      %s155 = sadd.s32 %s154, 1
      %p158 = scmp.eq.s32.totalorder %s22, 5
      %p159 = scmp.ne.s32.totalorder %s154, %s156
      %p160 = scmp.eq.s32.totalorder %s22, 0
      %p161 = por %p159, %p160
      %p162 = scmp.ne.s32.totalorder %s154, %s156
      %p163 = scmp.eq.s32.totalorder %s27, 5
      %p164 = por %p162, %p163
      %p165 = scmp.ne.s32.totalorder %s156, %s157
      %p166 = scmp.eq.s32.totalorder %s27, 0
      %p167 = por %p165, %p166
      %p168 = scmp.ne.s32.totalorder %s156, %s157
      %p169 = scmp.eq.s32.totalorder %s28, 5
      %p170 = por %p168, %p169
      %p172 = scmp.ne.s32.totalorder %s157, %s171
      %p173 = scmp.eq.s32.totalorder %s28, 0
      %p174 = por %p172, %p173
      %s176 = sadd.s32 %s175, 1
      %p179 = scmp.eq.s32.totalorder %s22, 5
      %p180 = scmp.ne.s32.totalorder %s175, %s177
      %p181 = scmp.eq.s32.totalorder %s22, 0
      %p182 = por %p180, %p181
      %p183 = scmp.ne.s32.totalorder %s175, %s177
      %p184 = scmp.eq.s32.totalorder %s27, 5
      %p185 = por %p183, %p184
      %p186 = scmp.ne.s32.totalorder %s177, %s178
      %p187 = scmp.eq.s32.totalorder %s27, 0
      %p188 = por %p186, %p187
      %p189 = scmp.ne.s32.totalorder %s177, %s178
      %p190 = scmp.eq.s32.totalorder %s28, 5
      %p191 = por %p189, %p190
      %p193 = scmp.ne.s32.totalorder %s178, %s192
      %p194 = scmp.eq.s32.totalorder %s28, 0
      %p195 = por %p193, %p194
      %s197 = sadd.s32 %s196, 1
      %p200 = scmp.eq.s32.totalorder %s22, 5
      %p201 = scmp.ne.s32.totalorder %s196, %s198
      %p202 = scmp.eq.s32.totalorder %s22, 0
      %p203 = por %p201, %p202
      %p204 = scmp.ne.s32.totalorder %s196, %s198
      %p205 = scmp.eq.s32.totalorder %s27, 5
      %p206 = por %p204, %p205
      %p207 = scmp.ne.s32.totalorder %s198, %s199
      %p208 = scmp.eq.s32.totalorder %s27, 0
      %p209 = por %p207, %p208
      %p210 = scmp.ne.s32.totalorder %s198, %s199
      %p211 = scmp.eq.s32.totalorder %s28, 5
      %p212 = por %p210, %p211
      %p214 = scmp.ne.s32.totalorder %s199, %s213
      %p215 = scmp.eq.s32.totalorder %s28, 0
      %p216 = por %p214, %p215
      %s218 = sadd.s32 %s217, 1
      %p221 = scmp.eq.s32.totalorder %s22, 5
      %p222 = scmp.ne.s32.totalorder %s217, %s219
      %p223 = scmp.eq.s32.totalorder %s22, 0
      %p224 = por %p222, %p223
      %p225 = scmp.ne.s32.totalorder %s217, %s219
      %p226 = scmp.eq.s32.totalorder %s27, 5
      %p227 = por %p225, %p226
      %p228 = scmp.ne.s32.totalorder %s219, %s220
      %p229 = scmp.eq.s32.totalorder %s27, 0
      %p230 = por %p228, %p229
      %p231 = scmp.ne.s32.totalorder %s219, %s220
      %p232 = scmp.eq.s32.totalorder %s28, 5
      %p233 = por %p231, %p232
      %p235 = scmp.ne.s32.totalorder %s220, %s234
      %p236 = scmp.eq.s32.totalorder %s28, 0
      %p237 = por %p235, %p236
      %s239 = sadd.s32 %s238, 1
      %p242 = scmp.eq.s32.totalorder %s22, 5
      %p243 = scmp.ne.s32.totalorder %s238, %s240
      %p244 = scmp.eq.s32.totalorder %s22, 0
      %p245 = por %p243, %p244
      %p246 = scmp.ne.s32.totalorder %s238, %s240
      %p247 = scmp.eq.s32.totalorder %s27, 5
      %p248 = por %p246, %p247
      %p249 = scmp.ne.s32.totalorder %s240, %s241
      %p250 = scmp.eq.s32.totalorder %s27, 0
      %p251 = por %p249, %p250
      %p252 = scmp.ne.s32.totalorder %s240, %s241
      %p253 = scmp.eq.s32.totalorder %s28, 5
      %p254 = por %p252, %p253
      %p256 = scmp.ne.s32.totalorder %s241, %s255
      %p257 = scmp.eq.s32.totalorder %s28, 0
      %p258 = por %p256, %p257
      %s260 = sadd.s32 %s259, 1
      %p263 = scmp.eq.s32.totalorder %s22, 5
      %p264 = scmp.ne.s32.totalorder %s259, %s261
      %p265 = scmp.eq.s32.totalorder %s22, 0
      %p266 = por %p264, %p265
      %p267 = scmp.ne.s32.totalorder %s259, %s261
      %p268 = scmp.eq.s32.totalorder %s27, 5
      %p269 = por %p267, %p268
      %p270 = scmp.ne.s32.totalorder %s261, %s262
      %p271 = scmp.eq.s32.totalorder %s27, 0
      %p272 = por %p270, %p271
      %p273 = scmp.ne.s32.totalorder %s261, %s262
      %p274 = scmp.eq.s32.totalorder %s28, 5
      %p275 = por %p273, %p274
      %p277 = scmp.ne.s32.totalorder %s262, %s276
      %p278 = scmp.eq.s32.totalorder %s28, 0
      %p279 = por %p277, %p278
      %s280 = ssub.s32 %s29, %s41
      %p281 = scmp.eq.s32.totalorder %s280, 0
      %s283 = sadd.s32 %s282, 1
      %s284 = scalar_select %p281, %s282, %s283
      %p287 = pneg %p281
      %p288 = scmp.eq.s32.totalorder %s22, 5
      %p289 = por %p287, %p288
      %p290 = scmp.ne.s32.totalorder %s282, %s285
      %p291 = scmp.eq.s32.totalorder %s22, 0
      %p292 = por %p290, %p291
      %p293 = scmp.ne.s32.totalorder %s282, %s285
      %p294 = scmp.eq.s32.totalorder %s27, 5
      %p295 = por %p293, %p294
      %p296 = scmp.ne.s32.totalorder %s285, %s286
      %p297 = scmp.eq.s32.totalorder %s27, 0
      %p298 = por %p296, %p297
      %p299 = scmp.ne.s32.totalorder %s285, %s286
      %p300 = scmp.eq.s32.totalorder %s28, 5
      %p301 = por %p299, %p300
      %p303 = scmp.ne.s32.totalorder %s286, %s302
      %p304 = scmp.eq.s32.totalorder %s28, 0
      %p305 = por %p303, %p304
      %p306 = scmp.le.s32.totalorder 1, %s22
      %p307 = scmp.lt.s32.totalorder %s22, 7
      %p308 = pnand %p306, %p307
      %p309 = pneg %p308
      // Predicated region
      $region9: #{tpu_custom_call.1} parent=5 // pred_check
        _
      $region10: #{tpu_custom_call.1} parent=5 // pred_check_branch
        %311 = sbr.rel (%p308) target = $region12
      $region11: #{tpu_custom_call.1} parent=5 // pred_region
        %s312 = ssub.s32 %s22, 1
        // Predicated region
        $region13: #{tpu_custom_call.1} parent=11 // pred_check
          %p313 = pneg %p83
        $region14: #{tpu_custom_call.1} parent=11 // pred_check_branch
          %315 = sbr.rel (%p313) target = $region16
        $region15: #{tpu_custom_call.1} parent=11 // pred_region
          _
        $region16: #{tpu_custom_call.1} parent=11 // pred_fallthru
          _
        // Predicated region
        $region17: #{tpu_custom_call.1} parent=11 // pred_check
          %p316 = pneg %p104
        $region18: #{tpu_custom_call.1} parent=11 // pred_check_branch
          %318 = sbr.rel (%p316) target = $region20
        $region19: #{tpu_custom_call.1} parent=11 // pred_region
          _
        $region20: #{tpu_custom_call.1} parent=11 // pred_fallthru
          _
        // Predicated region
        $region21: #{tpu_custom_call.1} parent=11 // pred_check
          %p319 = pneg %p125
        $region22: #{tpu_custom_call.1} parent=11 // pred_check_branch
          %321 = sbr.rel (%p319) target = $region24
        $region23: #{tpu_custom_call.1} parent=11 // pred_region
          %s323 = ssub.s32 512, 512
          %324 = vsyncadd [#allocation4], %s323
          %s325 = sshll.u32 [#allocation3], 4
          %s326 = int_to_ptr.vmem [resolvable:$true] %s325
          %331 = dma.hbm_to_vmem [thread:$0]  %s3, 512, %s326, [#allocation4], 64, 64, 4
        $region24: #{tpu_custom_call.1} parent=11 // pred_fallthru
          _
        // Predicated region
        $region25: #{tpu_custom_call.1} parent=11 // pred_check
          %p332 = pneg %p146
        $region26: #{tpu_custom_call.1} parent=11 // pred_check_branch
          %334 = sbr.rel (%p332) target = $region28
        $region27: #{tpu_custom_call.1} parent=11 // pred_region
          _
        $region28: #{tpu_custom_call.1} parent=11 // pred_fallthru
          _
        // Predicated region
        $region29: #{tpu_custom_call.1} parent=11 // pred_check
          %p335 = pneg %p167
        $region30: #{tpu_custom_call.1} parent=11 // pred_check_branch
          %337 = sbr.rel (%p335) target = $region32
        $region31: #{tpu_custom_call.1} parent=11 // pred_region
          %s339 = ssub.s32 2048, 2048
          %340 = vsyncadd [#allocation7], %s339
          %s341 = sshll.u32 [#allocation6], 4
          %s342 = int_to_ptr.vmem [resolvable:$true] %s341
          %347 = dma.hbm_to_vmem [thread:$0]  %s5, 2048, %s342, [#allocation7], 128, 128, 8
        $region32: #{tpu_custom_call.1} parent=11 // pred_fallthru
          _
        // Predicated region
        $region33: #{tpu_custom_call.1} parent=11 // pred_check
          %p348 = pneg %p188
        $region34: #{tpu_custom_call.1} parent=11 // pred_check_branch
          %350 = sbr.rel (%p348) target = $region36
        $region35: #{tpu_custom_call.1} parent=11 // pred_region
          _
        $region36: #{tpu_custom_call.1} parent=11 // pred_fallthru
          _
        // Predicated region
        $region37: #{tpu_custom_call.1} parent=11 // pred_check
          %p351 = pneg %p209
        $region38: #{tpu_custom_call.1} parent=11 // pred_check_branch
          %353 = sbr.rel (%p351) target = $region40
        $region39: #{tpu_custom_call.1} parent=11 // pred_region
          %s355 = ssub.s32 2048, 2048
          %356 = vsyncadd [#allocation7], %s355
          %s357 = sshll.u32 [#allocation8], 4
          %s358 = int_to_ptr.vmem [resolvable:$true] %s357
          %363 = dma.hbm_to_vmem [thread:$0]  %s7, 2048, %s358, [#allocation7], 64, 64, 4
        $region40: #{tpu_custom_call.1} parent=11 // pred_fallthru
          _
        // Predicated region
        $region41: #{tpu_custom_call.1} parent=11 // pred_check
          %p364 = pneg %p230
        $region42: #{tpu_custom_call.1} parent=11 // pred_check_branch
          %366 = sbr.rel (%p364) target = $region44
        $region43: #{tpu_custom_call.1} parent=11 // pred_region
          _
        $region44: #{tpu_custom_call.1} parent=11 // pred_fallthru
          _
        // Predicated region
        $region45: #{tpu_custom_call.1} parent=11 // pred_check
          %p367 = pneg %p251
        $region46: #{tpu_custom_call.1} parent=11 // pred_check_branch
          %369 = sbr.rel (%p367) target = $region48
        $region47: #{tpu_custom_call.1} parent=11 // pred_region
          _
        $region48: #{tpu_custom_call.1} parent=11 // pred_fallthru
          _
        // Predicated region
        $region49: #{tpu_custom_call.1} parent=11 // pred_check
          %p370 = pneg %p272
        $region50: #{tpu_custom_call.1} parent=11 // pred_check_branch
          %372 = sbr.rel (%p370) target = $region52
        $region51: #{tpu_custom_call.1} parent=11 // pred_region
          _
        $region52: #{tpu_custom_call.1} parent=11 // pred_fallthru
          _
      $region12: #{tpu_custom_call.1} parent=5 // pred_fallthru
        _
      %p373 = scmp.lt.s32.totalorder %s22, 6
      // Predicated region
      $region53: #{tpu_custom_call.1} parent=5 // pred_check
        %p374 = pneg %p373
      $region54: #{tpu_custom_call.1} parent=5 // pred_check_branch
        %376 = sbr.rel (%p374) target = $region56
      $region55: #{tpu_custom_call.1} parent=5 // pred_region
        // Predicated region
        $region57: #{tpu_custom_call.1} parent=55 // pred_check
          %p377 = pneg %p56
        $region58: #{tpu_custom_call.1} parent=55 // pred_check_branch
          %379 = sbr.rel (%p377) target = $region60
        $region59: #{tpu_custom_call.1} parent=55 // pred_region
          %p380 = scmp.lt.s32.totalorder %s29, 1
          %s381 = scalar_select %p380, %s29, 1
          %p382 = scmp.lt.s32.totalorder %s30, 2
          %s383 = scalar_select %p382, %s30, 2
          %s384 = smul.addr %s381, 3
          %s385 = sadd.s32 %s383, %s384
          %s386 = smul.addr %s385, 8
          %s387 = scalar_lea.vmem %s0, %s386
        $region60: #{tpu_custom_call.1} parent=55 // pred_fallthru
          _
      $region56: #{tpu_custom_call.1} parent=5 // pred_fallthru
        _
      %p388 = scmp.le.s32.totalorder 1, %s22
      %p389 = scmp.lt.s32.totalorder %s22, 7
      %p390 = pnand %p388, %p389
      %p391 = pneg %p390
      // Predicated region
      $region61: #{tpu_custom_call.1} parent=5 // pred_check
        _
      $region62: #{tpu_custom_call.1} parent=5 // pred_check_branch
        %393 = sbr.rel (%p390) target = $region64
      $region63: #{tpu_custom_call.1} parent=5 // pred_region
        %s394 = ssub.s32 %s22, 1
        // Predicated region
        $region65: #{tpu_custom_call.1} parent=63 // pred_check
          %p395 = pneg %p125
        $region66: #{tpu_custom_call.1} parent=63 // pred_check_branch
          %397 = sbr.rel (%p395) target = $region68
        $region67: #{tpu_custom_call.1} parent=63 // pred_region
          %398 = dma.done [#allocation4], 512
        $region68: #{tpu_custom_call.1} parent=63 // pred_fallthru
          _
        // Predicated region
        $region69: #{tpu_custom_call.1} parent=63 // pred_check
          %p399 = pneg %p167
        $region70: #{tpu_custom_call.1} parent=63 // pred_check_branch
          %401 = sbr.rel (%p399) target = $region72
        $region71: #{tpu_custom_call.1} parent=63 // pred_region
          %402 = dma.done [#allocation7], 2048
        $region72: #{tpu_custom_call.1} parent=63 // pred_fallthru
          _
        // Predicated region
        $region73: #{tpu_custom_call.1} parent=63 // pred_check
          %p403 = pneg %p209
        $region74: #{tpu_custom_call.1} parent=63 // pred_check_branch
          %405 = sbr.rel (%p403) target = $region76
        $region75: #{tpu_custom_call.1} parent=63 // pred_region
          %406 = dma.done [#allocation7], 2048
        $region76: #{tpu_custom_call.1} parent=63 // pred_fallthru
          _
        %p407 = scmp.lt.s32.totalorder %s31, 1
        %s408 = scalar_select %p407, %s31, 1
        %p409 = scmp.lt.s32.totalorder %s32, 2
        %s410 = scalar_select %p409, %s32, 2
        %s411 = smul.addr %s408, 3
        %s412 = sadd.s32 %s410, %s411
        %s413 = smul.addr %s412, 8
        %s414 = scalar_lea.vmem %s0, %s413
        %p415 = pneg %p62
        %p416 = pneg %p59
        %p417 = pneg %p83
        %p418 = pneg %p80
        %p419 = pneg %p104
        %p420 = pneg %p101
        %p421 = pneg %p125
        %p422 = pneg %p122
        %p423 = pneg %p146
        %p424 = pneg %p143
        %p425 = pneg %p167
        %p426 = pneg %p164
        %p427 = pneg %p188
        %p428 = pneg %p185
        %p429 = pneg %p209
        %p430 = pneg %p206
        %p431 = pneg %p230
        %p432 = pneg %p227
        %p433 = pneg %p251
        %p434 = pneg %p248
        %p435 = pneg %p272
        %p436 = pneg %p269
        %p437 = pneg %p298
        %p438 = pneg %p295
        %s439 = sand.u32 %s285, 1
        %s440 = scalar_lea.sflag [#allocation5], %s439
        %s441 = sand.u32 %s285, 1
        %s442 = scalar_lea.vmem [#allocation9], %s441
        %p443 = scmp.lt.s32.totalorder %s31, 1
        %s444 = scalar_select %p443, %s31, 1
        %p445 = scmp.lt.s32.totalorder %s32, 2
        %s446 = scalar_select %p445, %s32, 2
        %s447 = smul.addr %s444, 3
        %s448 = sadd.s32 %s446, %s447
        %s449 = smul.addr %s448, 8
        %s450 = scalar_lea.vmem %s0, %s449
        %p452 = scmp.eq.s32.totalorder %s32, 0
        // Predicated region
        $region77: #{tpu_custom_call.1} parent=63 // pred_check
          %p453 = pneg %p452
        $region78: #{tpu_custom_call.1} parent=63 // pred_check_branch
          %455 = sbr.rel (%p453) target = $region80
        $region79: #{tpu_custom_call.1} parent=63 // pred_region
          %v456 = vlaneseq
          %vm457 = vcmp.ge.s32.totalorder %v456, 0
          %vm458 = vcmp.lt.s32.totalorder %v456, 256
          %vm459 = vmand %vm457, %vm458
          %460 = vst.msk [vmem:[#allocation2] sm:$0x3] %vm459, -inf
        $region80: #{tpu_custom_call.1} parent=63 // pred_fallthru
          _
        %v461 = vld [vmem:[%s450] sm:$0xff]
        %v462 = vld [vmem:[%s1] sm:$0x7]
        %464 = vset.pattern.permute.xlu0 0
        %465 = vperm.xlu0 %464, %v461
        %v466 = vpop.permute.xlu0 %465
        %v468 = vlaneseq
        %v469 = vshrl.u32 %v468, 7
        %v470 = vsub.s32 0, %v469
        %v471 = vrot.slane %v462, %v470
        %v472 = vmul.f32 %v466, %v471
        %473 = vset.pattern.permute.xlu0 1
        %474 = vperm.xlu0 %473, %v461
        %v475 = vpop.permute.xlu0 %474
        %v477 = vlaneseq
        %v478 = vshrl.u32 %v477, 7
        %v479 = vsub.s32 1, %v478
        %v480 = vrot.slane %v462, %v479
        %v481 = vmul.f32 %v475, %v480
        %v482 = vadd.f32 %v472, %v481
        %483 = vset.pattern.permute.xlu0 2
        %484 = vperm.xlu0 %483, %v461
        %v485 = vpop.permute.xlu0 %484
        %v487 = vlaneseq
        %v488 = vshrl.u32 %v487, 7
        %v489 = vsub.s32 2, %v488
        %v490 = vrot.slane %v462, %v489
        %v491 = vmul.f32 %v485, %v490
        %v492 = vadd.f32 %v482, %v491
        %v493 = vld [vmem:[%s2] sm:$0x1]
        %v495 = vlaneseq
        %v496 = vshrl.u32 %v495, 7
        %v497 = vsub.s32 0, %v496
        %v498 = vrot.slane %v493, %v497
        %v500 = vadd.f32 %v492, %v498
        %v501 = vmax.f32 %v500, 0.0
        %v502 = vpack.c.bf16 %v501, %v501
        %v503 = vld [vmem:[#allocation3] sm:$0xf]
        %v504 = vld [vmem:[#allocation3 + $0x4] sm:$0xf]
        %v505 = vld [vmem:[#allocation3 + $0x8] sm:$0xf]
        %v506 = vld [vmem:[#allocation3 + $0xc] sm:$0xf]
        %v507 = vld [vmem:[#allocation3 + $0x10] sm:$0xf]
        %v508 = vld [vmem:[#allocation3 + $0x14] sm:$0xf]
        %v509 = vld [vmem:[#allocation3 + $0x18] sm:$0xf]
        %v510 = vld [vmem:[#allocation3 + $0x1c] sm:$0xf]
        %v511 = vld [vmem:[%s4] sm:$0x1]
        %v513 = vlaneseq
        %v514 = vshrl.u32 %v513, 7
        %v515 = vsub.s32 0, %v514
        %v516 = vrot.slane %v511, %v515
        %v526 = vunpack.c.l.b16 %v503
        %v527 = vunpack.c.l.b16 %v504
        %v528 = vunpack.c.l.b16 %v505
        %v529 = vunpack.c.l.b16 %v506
        %v530 = vunpack.c.l.b16 %v507
        %v531 = vunpack.c.l.b16 %v508
        %v532 = vunpack.c.l.b16 %v509
        %v533 = vunpack.c.l.b16 %v510
        %v534 = vpack.c.b16 %v527, %v526
        %v535 = vpack.c.b16 %v529, %v528
        %v536 = vpack.c.b16 %v531, %v530
        %v537 = vpack.c.b16 %v533, %v532
        %vm542 = vcmask 523264
        %v544 = vsel %vm542, %v502, 0
        %546 = vmatprep.subr.bf16.mxu0 0
        %547 = vmatpush1.bf16.msra.mxu0 %v534
        %548 = vmatprep.subr.bf16.mxu0 0
        %549 = vmatpush1.bf16.msra.mxu0 %v535
        %550 = vmatprep.subr.bf16.mxu0 0
        %551 = vmatpush1.bf16.msra.mxu0 %v536
        %552 = vmatprep.subr.bf16.mxu0 0
        %553 = vmatpush1.bf16.msra.mxu0 %v537
        %554 = vmatprep.subr.bf16.mxu0 0
        %555 = vmatpush1.bf16.msra.mxu0 0
        %556 = vmatprep.subr.bf16.mxu0 0
        %557 = vmatpush1.bf16.msra.mxu0 0
        %558 = vmatprep.subr.bf16.mxu0 0
        %559 = vmatpush1.bf16.msra.mxu0 0
        %560 = vmatprep.subr.bf16.mxu0 0
        %561 = vmatpush1.bf16.msra.mxu0 0
        %562 = vmatprep.subr.bf16.mxu0 0
        %563 = vmatpush1.bf16.msra.mxu0 0
        %564 = vmatprep.subr.bf16.mxu0 0
        %565 = vmatpush1.bf16.msra.mxu0 0
        %566 = vmatprep.subr.bf16.mxu0 0
        %567 = vmatpush1.bf16.msra.mxu0 0
        %568 = vmatprep.subr.bf16.mxu0 0
        %569 = vmatpush1.bf16.msra.mxu0 0
        %570 = vmatprep.subr.bf16.mxu0 0
        %571 = vmatpush1.bf16.msra.mxu0 0
        %572 = vmatprep.subr.bf16.mxu0 0
        %573 = vmatpush1.bf16.msra.mxu0 0
        %574 = vmatprep.subr.bf16.mxu0 0
        %575 = vmatpush1.bf16.msra.mxu0 0
        %576 = vmatprep.subr.bf16.mxu0 0
        %577 = vmatpush1.bf16.msra.mxu0 0
        %578 = vmatprep.mubr.bf16.mxu0 0
        %579 = vmatmul.mubr.bf16.gmra.mrb[0].mxu0 %v544
        %v580 = vpop.f32.mrb[0].mxu0
        %v581 = vadd.f32 %v516, %v580
        %v582 = vpop.f32.mrb[0].mxu0
        %v583 = vpop.f32.mrb[0].mxu0
        %v584 = vpop.f32.mrb[0].mxu0
        %585 = vdwg.mxu0
        %v586 = vmax.f32 %v581, 0.0
        %v587 = vpack.c.bf16 %v586, %v586
        %v588 = vld [vmem:[#allocation6] sm:$0xff]
        %v589 = vld [vmem:[#allocation6 + $0x8] sm:$0xff]
        %v590 = vld [vmem:[#allocation6 + $0x10] sm:$0xff]
        %v591 = vld [vmem:[#allocation6 + $0x18] sm:$0xff]
        %v592 = vld [vmem:[#allocation6 + $0x20] sm:$0xff]
        %v593 = vld [vmem:[#allocation6 + $0x28] sm:$0xff]
        %v594 = vld [vmem:[#allocation6 + $0x30] sm:$0xff]
        %v595 = vld [vmem:[#allocation6 + $0x38] sm:$0xff]
        %v596 = vld [vmem:[#allocation6 + $0x40] sm:$0xff]
        %v597 = vld [vmem:[#allocation6 + $0x48] sm:$0xff]
        %v598 = vld [vmem:[#allocation6 + $0x50] sm:$0xff]
        %v599 = vld [vmem:[#allocation6 + $0x58] sm:$0xff]
        %v600 = vld [vmem:[#allocation6 + $0x60] sm:$0xff]
        %v601 = vld [vmem:[#allocation6 + $0x68] sm:$0xff]
        %v602 = vld [vmem:[#allocation6 + $0x70] sm:$0xff]
        %v603 = vld [vmem:[#allocation6 + $0x78] sm:$0xff]
        %v604 = vld [vmem:[%s6] sm:$0x3]
        %v606 = vlaneseq
        %v607 = vshrl.u32 %v606, 7
        %v608 = vsub.s32 0, %v607
        %v609 = vrot.slane %v604, %v608
        %v610 = vlaneseq
        %v611 = vshrl.u32 %v610, 7
        %v612 = vsub.s32 1, %v611
        %v613 = vrot.slane %v604, %v612
        %v632 = vunpack.c.l.b16 %v588
        %v633 = vunpack.c.h.b16 %v588
        %v634 = vunpack.c.l.b16 %v589
        %v635 = vunpack.c.h.b16 %v589
        %v636 = vunpack.c.l.b16 %v590
        %v637 = vunpack.c.h.b16 %v590
        %v638 = vunpack.c.l.b16 %v591
        %v639 = vunpack.c.h.b16 %v591
        %v640 = vunpack.c.l.b16 %v592
        %v641 = vunpack.c.h.b16 %v592
        %v642 = vunpack.c.l.b16 %v593
        %v643 = vunpack.c.h.b16 %v593
        %v644 = vunpack.c.l.b16 %v594
        %v645 = vunpack.c.h.b16 %v594
        %v646 = vunpack.c.l.b16 %v595
        %v647 = vunpack.c.h.b16 %v595
        %v648 = vunpack.c.l.b16 %v596
        %v649 = vunpack.c.h.b16 %v596
        %v650 = vunpack.c.l.b16 %v597
        %v651 = vunpack.c.h.b16 %v597
        %v652 = vunpack.c.l.b16 %v598
        %v653 = vunpack.c.h.b16 %v598
        %v654 = vunpack.c.l.b16 %v599
        %v655 = vunpack.c.h.b16 %v599
        %v656 = vunpack.c.l.b16 %v600
        %v657 = vunpack.c.h.b16 %v600
        %v658 = vunpack.c.l.b16 %v601
        %v659 = vunpack.c.h.b16 %v601
        %v660 = vunpack.c.l.b16 %v602
        %v661 = vunpack.c.h.b16 %v602
        %v662 = vunpack.c.l.b16 %v603
        %v663 = vunpack.c.h.b16 %v603
        %v664 = vpack.c.b16 %v634, %v632
        %v665 = vpack.c.b16 %v635, %v633
        %v666 = vpack.c.b16 %v638, %v636
        %v667 = vpack.c.b16 %v639, %v637
        %v668 = vpack.c.b16 %v642, %v640
        %v669 = vpack.c.b16 %v643, %v641
        %v670 = vpack.c.b16 %v646, %v644
        %v671 = vpack.c.b16 %v647, %v645
        %v672 = vpack.c.b16 %v650, %v648
        %v673 = vpack.c.b16 %v651, %v649
        %v674 = vpack.c.b16 %v654, %v652
        %v675 = vpack.c.b16 %v655, %v653
        %v676 = vpack.c.b16 %v658, %v656
        %v677 = vpack.c.b16 %v659, %v657
        %v678 = vpack.c.b16 %v662, %v660
        %v679 = vpack.c.b16 %v663, %v661
        %696 = vmatprep.subr.bf16.mxu0 %v665
        %697 = vmatpush1.bf16.msra.mxu0 %v664
        %698 = vmatprep.subr.bf16.mxu0 %v667
        %699 = vmatpush1.bf16.msra.mxu0 %v666
        %700 = vmatprep.subr.bf16.mxu0 %v669
        %701 = vmatpush1.bf16.msra.mxu0 %v668
        %702 = vmatprep.subr.bf16.mxu0 %v671
        %703 = vmatpush1.bf16.msra.mxu0 %v670
        %704 = vmatprep.subr.bf16.mxu0 %v673
        %705 = vmatpush1.bf16.msra.mxu0 %v672
        %706 = vmatprep.subr.bf16.mxu0 %v675
        %707 = vmatpush1.bf16.msra.mxu0 %v674
        %708 = vmatprep.subr.bf16.mxu0 %v677
        %709 = vmatpush1.bf16.msra.mxu0 %v676
        %710 = vmatprep.subr.bf16.mxu0 %v679
        %711 = vmatpush1.bf16.msra.mxu0 %v678
        %712 = vmatprep.subr.bf16.mxu0 0
        %713 = vmatpush1.bf16.msra.mxu0 0
        %714 = vmatprep.subr.bf16.mxu0 0
        %715 = vmatpush1.bf16.msra.mxu0 0
        %716 = vmatprep.subr.bf16.mxu0 0
        %717 = vmatpush1.bf16.msra.mxu0 0
        %718 = vmatprep.subr.bf16.mxu0 0
        %719 = vmatpush1.bf16.msra.mxu0 0
        %720 = vmatprep.subr.bf16.mxu0 0
        %721 = vmatpush1.bf16.msra.mxu0 0
        %722 = vmatprep.subr.bf16.mxu0 0
        %723 = vmatpush1.bf16.msra.mxu0 0
        %724 = vmatprep.subr.bf16.mxu0 0
        %725 = vmatpush1.bf16.msra.mxu0 0
        %726 = vmatprep.subr.bf16.mxu0 0
        %727 = vmatpush1.bf16.msra.mxu0 0
        %728 = vmatprep.mubr.bf16.mxu0 0
        %729 = vmatmul.mubr.bf16.gmra.mrb[0].mxu0 %v587
        %v730 = vpop.f32.mrb[0].mxu0
        %v731 = vadd.f32 %v609, %v730
        %v732 = vpop.f32.mrb[0].mxu0
        %v733 = vadd.f32 %v613, %v732
        %v734 = vpop.f32.mrb[0].mxu0
        %v735 = vpop.f32.mrb[0].mxu0
        %736 = vdwg.mxu0
        %v737 = vmax.f32 %v731, 0.0
        %v738 = vmax.f32 %v733, 0.0
        %v739 = vld [vmem:[#allocation2] sm:$0x3]
        %v740 = vrot.slane %v737, 4
        %v741 = vmax.f32 %v737, %v740
        %v742 = vrot.slane %v741, 2
        %v743 = vmax.f32 %v741, %v742
        %v744 = vrot.slane %v743, 1
        %v745 = vmax.f32 %v743, %v744
        %v746 = vrot.slane %v738, 4
        %v747 = vmax.f32 %v738, %v746
        %v748 = vrot.slane %v747, 2
        %v749 = vmax.f32 %v747, %v748
        %v750 = vrot.slane %v749, 1
        %v751 = vmax.f32 %v749, %v750
        %v754 = vcombine.low %v745, %v751
        %v756 = vunpack.c.l.s4 1966171168
        %v757 = vunpack.c.0.s8 %v756
        %v758 = vlaneseq
        %v759 = vshrl.u32 %v758, 7
        %v760 = vsub.s32 %v757, %v759
        %v761 = vrot.slane %v754, %v760
        %v763 = vunpack.c.l.s4 1966171168
        %v764 = vunpack.c.0.s8 %v763
        %v765 = vlaneseq
        %v766 = vshrl.u32 %v765, 7
        %v767 = vsub.s32 %v764, %v766
        %v768 = vrot.slane %v761, %v767
        %v770 = vmax.f32 %v739, %v768
        %v771 = vlaneseq
        %vm772 = vcmp.ge.s32.totalorder %v771, 0
        %vm773 = vcmp.lt.s32.totalorder %v771, 256
        %vm774 = vmand %vm772, %vm773
        %775 = vst.msk [vmem:[#allocation2] sm:$0x3] %vm774, %v770
        %p776 = scmp.eq.s32.totalorder %s32, 2
        // Predicated region
        $region81: #{tpu_custom_call.1} parent=63 // pred_check
          %p777 = pneg %p776
        $region82: #{tpu_custom_call.1} parent=63 // pred_check_branch
          %779 = sbr.rel (%p777) target = $region84
        $region83: #{tpu_custom_call.1} parent=63 // pred_region
          %v780 = vld [vmem:[#allocation2] sm:$0x3]
          %v782 = vlaneseq
          %v783 = vshrl.u32 %v782, 7
          %v784 = vsub.s32 0, %v783
          %v785 = vrot.slane %v780, %v784
          %v786 = vlaneseq
          %v787 = vshrl.u32 %v786, 7
          %v788 = vsub.s32 1, %v787
          %v789 = vrot.slane %v780, %v788
          %v792 = vpack.c.bf16 %v785, %v785
          %v793 = vpack.c.bf16 %v789, %v789
          %v794 = vld [vmem:[#allocation8] sm:$0xf]
          %v795 = vld [vmem:[#allocation8 + $0x4] sm:$0xf]
          %v796 = vld [vmem:[#allocation8 + $0x8] sm:$0xf]
          %v797 = vld [vmem:[#allocation8 + $0xc] sm:$0xf]
          %v798 = vld [vmem:[#allocation8 + $0x10] sm:$0xf]
          %v799 = vld [vmem:[#allocation8 + $0x14] sm:$0xf]
          %v800 = vld [vmem:[#allocation8 + $0x18] sm:$0xf]
          %v801 = vld [vmem:[#allocation8 + $0x1c] sm:$0xf]
          %v802 = vld [vmem:[#allocation8 + $0x20] sm:$0xf]
          %v803 = vld [vmem:[#allocation8 + $0x24] sm:$0xf]
          %v804 = vld [vmem:[#allocation8 + $0x28] sm:$0xf]
          %v805 = vld [vmem:[#allocation8 + $0x2c] sm:$0xf]
          %v806 = vld [vmem:[#allocation8 + $0x30] sm:$0xf]
          %v807 = vld [vmem:[#allocation8 + $0x34] sm:$0xf]
          %v808 = vld [vmem:[#allocation8 + $0x38] sm:$0xf]
          %v809 = vld [vmem:[#allocation8 + $0x3c] sm:$0xf]
          %v810 = vld [vmem:[#allocation8 + $0x40] sm:$0xf]
          %v811 = vld [vmem:[#allocation8 + $0x44] sm:$0xf]
          %v812 = vld [vmem:[#allocation8 + $0x48] sm:$0xf]
          %v813 = vld [vmem:[#allocation8 + $0x4c] sm:$0xf]
          %v814 = vld [vmem:[#allocation8 + $0x50] sm:$0xf]
          %v815 = vld [vmem:[#allocation8 + $0x54] sm:$0xf]
          %v816 = vld [vmem:[#allocation8 + $0x58] sm:$0xf]
          %v817 = vld [vmem:[#allocation8 + $0x5c] sm:$0xf]
          %v818 = vld [vmem:[#allocation8 + $0x60] sm:$0xf]
          %v819 = vld [vmem:[#allocation8 + $0x64] sm:$0xf]
          %v820 = vld [vmem:[#allocation8 + $0x68] sm:$0xf]
          %v821 = vld [vmem:[#allocation8 + $0x6c] sm:$0xf]
          %v822 = vld [vmem:[#allocation8 + $0x70] sm:$0xf]
          %v823 = vld [vmem:[#allocation8 + $0x74] sm:$0xf]
          %v824 = vld [vmem:[#allocation8 + $0x78] sm:$0xf]
          %v825 = vld [vmem:[#allocation8 + $0x7c] sm:$0xf]
          %v826 = vld [vmem:[%s8] sm:$0x1]
          %v859 = vunpack.c.l.b16 %v794
          %v860 = vunpack.c.l.b16 %v795
          %v861 = vunpack.c.l.b16 %v796
          %v862 = vunpack.c.l.b16 %v797
          %v863 = vunpack.c.l.b16 %v798
          %v864 = vunpack.c.l.b16 %v799
          %v865 = vunpack.c.l.b16 %v800
          %v866 = vunpack.c.l.b16 %v801
          %v867 = vunpack.c.l.b16 %v802
          %v868 = vunpack.c.l.b16 %v803
          %v869 = vunpack.c.l.b16 %v804
          %v870 = vunpack.c.l.b16 %v805
          %v871 = vunpack.c.l.b16 %v806
          %v872 = vunpack.c.l.b16 %v807
          %v873 = vunpack.c.l.b16 %v808
          %v874 = vunpack.c.l.b16 %v809
          %v875 = vunpack.c.l.b16 %v810
          %v876 = vunpack.c.l.b16 %v811
          %v877 = vunpack.c.l.b16 %v812
          %v878 = vunpack.c.l.b16 %v813
          %v879 = vunpack.c.l.b16 %v814
          %v880 = vunpack.c.l.b16 %v815
          %v881 = vunpack.c.l.b16 %v816
          %v882 = vunpack.c.l.b16 %v817
          %v883 = vunpack.c.l.b16 %v818
          %v884 = vunpack.c.l.b16 %v819
          %v885 = vunpack.c.l.b16 %v820
          %v886 = vunpack.c.l.b16 %v821
          %v887 = vunpack.c.l.b16 %v822
          %v888 = vunpack.c.l.b16 %v823
          %v889 = vunpack.c.l.b16 %v824
          %v890 = vunpack.c.l.b16 %v825
          %v891 = vpack.c.b16 %v860, %v859
          %v892 = vpack.c.b16 %v862, %v861
          %v893 = vpack.c.b16 %v864, %v863
          %v894 = vpack.c.b16 %v866, %v865
          %v895 = vpack.c.b16 %v868, %v867
          %v896 = vpack.c.b16 %v870, %v869
          %v897 = vpack.c.b16 %v872, %v871
          %v898 = vpack.c.b16 %v874, %v873
          %v899 = vpack.c.b16 %v876, %v875
          %v900 = vpack.c.b16 %v878, %v877
          %v901 = vpack.c.b16 %v880, %v879
          %v902 = vpack.c.b16 %v882, %v881
          %v903 = vpack.c.b16 %v884, %v883
          %v904 = vpack.c.b16 %v886, %v885
          %v905 = vpack.c.b16 %v888, %v887
          %v906 = vpack.c.b16 %v890, %v889
          %923 = vmatprep.subr.bf16.mxu0 0
          %924 = vmatpush1.bf16.msra.mxu0 %v891
          %925 = vmatprep.subr.bf16.mxu0 0
          %926 = vmatpush1.bf16.msra.mxu0 %v892
          %927 = vmatprep.subr.bf16.mxu0 0
          %928 = vmatpush1.bf16.msra.mxu0 %v893
          %929 = vmatprep.subr.bf16.mxu0 0
          %930 = vmatpush1.bf16.msra.mxu0 %v894
          %931 = vmatprep.subr.bf16.mxu0 0
          %932 = vmatpush1.bf16.msra.mxu0 %v895
          %933 = vmatprep.subr.bf16.mxu0 0
          %934 = vmatpush1.bf16.msra.mxu0 %v896
          %935 = vmatprep.subr.bf16.mxu0 0
          %936 = vmatpush1.bf16.msra.mxu0 %v897
          %937 = vmatprep.subr.bf16.mxu0 0
          %938 = vmatpush1.bf16.msra.mxu0 %v898
          %939 = vmatprep.subr.bf16.mxu0 0
          %940 = vmatpush1.bf16.msra.mxu0 %v899
          %941 = vmatprep.subr.bf16.mxu0 0
          %942 = vmatpush1.bf16.msra.mxu0 %v900
          %943 = vmatprep.subr.bf16.mxu0 0
          %944 = vmatpush1.bf16.msra.mxu0 %v901
          %945 = vmatprep.subr.bf16.mxu0 0
          %946 = vmatpush1.bf16.msra.mxu0 %v902
          %947 = vmatprep.subr.bf16.mxu0 0
          %948 = vmatpush1.bf16.msra.mxu0 %v903
          %949 = vmatprep.subr.bf16.mxu0 0
          %950 = vmatpush1.bf16.msra.mxu0 %v904
          %951 = vmatprep.subr.bf16.mxu0 0
          %952 = vmatpush1.bf16.msra.mxu0 %v905
          %953 = vmatprep.subr.bf16.mxu0 0
          %954 = vmatpush1.bf16.msra.mxu0 %v906
          %955 = vmatprep.mubr.bf16.mxu0 %v793
          %956 = vmatmul.mubr.bf16.gmra.mrb[0].mxu0 %v792
          %v957 = vpop.f32.mrb[0].mxu0
          %v958 = vadd.f32 %v826, %v957
          %v959 = vpop.f32.mrb[0].mxu0
          %v960 = vpop.f32.mrb[0].mxu0
          %v961 = vpop.f32.mrb[0].mxu0
          %962 = vdwg.mxu0
          %v963 = vmax.f32 %v958, 0.0
          %v964 = vpack.c.bf16 %v963, %v963
          %v965 = vld [vmem:[%s9] sm:$0xf]
          %v966 = vld [vmem:[%s9 + $0x4] sm:$0xf]
          %v967 = vld [vmem:[%s9 + $0x8] sm:$0xf]
          %v968 = vld [vmem:[%s9 + $0xc] sm:$0xf]
          %v969 = vld [vmem:[%s9 + $0x10] sm:$0xf]
          %v970 = vld [vmem:[%s9 + $0x14] sm:$0xf]
          %v971 = vld [vmem:[%s9 + $0x18] sm:$0xf]
          %v972 = vld [vmem:[%s9 + $0x1c] sm:$0xf]
          %v973 = vld [vmem:[%s9 + $0x20] sm:$0xf]
          %v974 = vld [vmem:[%s9 + $0x24] sm:$0xf]
          %v975 = vld [vmem:[%s9 + $0x28] sm:$0xf]
          %v976 = vld [vmem:[%s9 + $0x2c] sm:$0xf]
          %v977 = vld [vmem:[%s9 + $0x30] sm:$0xf]
          %v978 = vld [vmem:[%s9 + $0x34] sm:$0xf]
          %v979 = vld [vmem:[%s9 + $0x38] sm:$0xf]
          %v980 = vld [vmem:[%s9 + $0x3c] sm:$0xf]
          %v981 = vld [vmem:[%s10] sm:$0x1]
          %v998 = vunpack.c.l.b16 %v965
          %v999 = vunpack.c.l.b16 %v966
          %v1000 = vunpack.c.l.b16 %v967
          %v1001 = vunpack.c.l.b16 %v968
          %v1002 = vunpack.c.l.b16 %v969
          %v1003 = vunpack.c.l.b16 %v970
          %v1004 = vunpack.c.l.b16 %v971
          %v1005 = vunpack.c.l.b16 %v972
          %v1006 = vunpack.c.l.b16 %v973
          %v1007 = vunpack.c.l.b16 %v974
          %v1008 = vunpack.c.l.b16 %v975
          %v1009 = vunpack.c.l.b16 %v976
          %v1010 = vunpack.c.l.b16 %v977
          %v1011 = vunpack.c.l.b16 %v978
          %v1012 = vunpack.c.l.b16 %v979
          %v1013 = vunpack.c.l.b16 %v980
          %v1014 = vpack.c.b16 %v999, %v998
          %v1015 = vpack.c.b16 %v1001, %v1000
          %v1016 = vpack.c.b16 %v1003, %v1002
          %v1017 = vpack.c.b16 %v1005, %v1004
          %v1018 = vpack.c.b16 %v1007, %v1006
          %v1019 = vpack.c.b16 %v1009, %v1008
          %v1020 = vpack.c.b16 %v1011, %v1010
          %v1021 = vpack.c.b16 %v1013, %v1012
          %1030 = vmatprep.subr.bf16.mxu0 0
          %1031 = vmatpush1.bf16.msra.mxu0 %v1014
          %1032 = vmatprep.subr.bf16.mxu0 0
          %1033 = vmatpush1.bf16.msra.mxu0 %v1015
          %1034 = vmatprep.subr.bf16.mxu0 0
          %1035 = vmatpush1.bf16.msra.mxu0 %v1016
          %1036 = vmatprep.subr.bf16.mxu0 0
          %1037 = vmatpush1.bf16.msra.mxu0 %v1017
          %1038 = vmatprep.subr.bf16.mxu0 0
          %1039 = vmatpush1.bf16.msra.mxu0 %v1018
          %1040 = vmatprep.subr.bf16.mxu0 0
          %1041 = vmatpush1.bf16.msra.mxu0 %v1019
          %1042 = vmatprep.subr.bf16.mxu0 0
          %1043 = vmatpush1.bf16.msra.mxu0 %v1020
          %1044 = vmatprep.subr.bf16.mxu0 0
          %1045 = vmatpush1.bf16.msra.mxu0 %v1021
          %1046 = vmatprep.subr.bf16.mxu0 0
          %1047 = vmatpush1.bf16.msra.mxu0 0
          %1048 = vmatprep.subr.bf16.mxu0 0
          %1049 = vmatpush1.bf16.msra.mxu0 0
          %1050 = vmatprep.subr.bf16.mxu0 0
          %1051 = vmatpush1.bf16.msra.mxu0 0
          %1052 = vmatprep.subr.bf16.mxu0 0
          %1053 = vmatpush1.bf16.msra.mxu0 0
          %1054 = vmatprep.subr.bf16.mxu0 0
          %1055 = vmatpush1.bf16.msra.mxu0 0
          %1056 = vmatprep.subr.bf16.mxu0 0
          %1057 = vmatpush1.bf16.msra.mxu0 0
          %1058 = vmatprep.subr.bf16.mxu0 0
          %1059 = vmatpush1.bf16.msra.mxu0 0
          %1060 = vmatprep.subr.bf16.mxu0 0
          %1061 = vmatpush1.bf16.msra.mxu0 0
          %1062 = vmatprep.mubr.bf16.mxu0 0
          %1063 = vmatmul.mubr.bf16.gmra.mrb[0].mxu0 %v964
          %v1064 = vpop.f32.mrb[0].mxu0
          %v1065 = vadd.f32 %v981, %v1064
          %v1066 = vpop.f32.mrb[0].mxu0
          %v1067 = vpop.f32.mrb[0].mxu0
          %v1068 = vpop.f32.mrb[0].mxu0
          %1069 = vdwg.mxu0
          %1070 = vst [vmem:[%s442] sm:$0x1] %v1065
        $region84: #{tpu_custom_call.1} parent=63 // pred_fallthru
          _
        %s1071 = sand.u32 %s285, 1
        %s1072 = scalar_lea.sflag [#allocation5], %s1071
        %s1073 = sand.u32 %s285, 1
        %s1074 = scalar_lea.vmem [#allocation9], %s1073
        // Predicated region
        $region85: #{tpu_custom_call.1} parent=63 // pred_check
          %p1075 = pneg %p295
        $region86: #{tpu_custom_call.1} parent=63 // pred_check_branch
          %1077 = sbr.rel (%p1075) target = $region88
        $region87: #{tpu_custom_call.1} parent=63 // pred_region
          %s1079 = ssub.s32 16, 16
          %1080 = vsyncadd %s1072, %s1079
          %s1081 = smul.addr %s31, 16
          %s1082 = scalar_lea.hbm %s11, %s1081
          %s1084 = sshll.u32 %s1074, 4
          %s1085 = int_to_ptr.vmem [resolvable:$true] %s1084
          %1087 = dma.vmem_to_hbm [thread:$0]  %s1085, 16, %s1082, %s1072
        $region88: #{tpu_custom_call.1} parent=63 // pred_fallthru
          _
      $region64: #{tpu_custom_call.1} parent=5 // pred_fallthru
        _
      %p1088 = scmp.le.s32.totalorder 2, %s22
      // Predicated region
      $region89: #{tpu_custom_call.1} parent=5 // pred_check
        %p1089 = pneg %p1088
      $region90: #{tpu_custom_call.1} parent=5 // pred_check_branch
        %1091 = sbr.rel (%p1089) target = $region92
      $region91: #{tpu_custom_call.1} parent=5 // pred_region
        %s1092 = ssub.s32 %s22, 2
        // Predicated region
        $region93: #{tpu_custom_call.1} parent=91 // pred_check
          %p1093 = pneg %p301
        $region94: #{tpu_custom_call.1} parent=91 // pred_check_branch
          %1095 = sbr.rel (%p1093) target = $region96
        $region95: #{tpu_custom_call.1} parent=91 // pred_region
          %s1096 = sand.u32 %s286, 1
          %s1097 = scalar_lea.sflag [#allocation5], %s1096
          %s1098 = sand.u32 %s286, 1
          %s1099 = scalar_lea.vmem [#allocation9], %s1098
          %1100 = dma.done %s1097, 16
        $region96: #{tpu_custom_call.1} parent=91 // pred_fallthru
          _
      $region92: #{tpu_custom_call.1} parent=5 // pred_fallthru
        _
    $region6: #{tpu_custom_call.1} parent=1 // loop_footer
      %s26 = sadd.s32 1, %s22
    $region7: #{tpu_custom_call.1} parent=1 // loop_footer_branch
      %21 = sbr.rel target = $region3
    $region8: #{tpu_custom_call.1} parent=1 // loop_exit
      _
    %1101 = vsyncpa [#allocation4], 1
    %s1102 = scalar_lea.sflag [#allocation4], 1
    %1103 = vsyncpa %s1102, 1
    %1104 = vsyncpa [#allocation7], 1
    %1105 = vsyncpa [#allocation5], 1
    %s1106 = scalar_lea.sflag [#allocation5], 1
    %1107 = vsyncpa %s1106, 1

</llo_original>
